<compile_context>
chip_gen: v7x
topology: tpu7x:2x2x1
jax: 0.10.0
libtpu: 0.0.40
codegen_flags: <defaults>
</compile_context>

<pallas_src>
import math
import functools

import jax
import jax.numpy as jnp
from jax.experimental import pallas as pl
from jax.experimental.pallas import tpu as pltpu


def _round_up(n: int, m: int) -> int:
    return ((n + m - 1) // m) * m


def _make_kernel(half_dim: int, split_halves: bool):
    def kernel(x_ref, freq_ref, o_ref):
        # x_ref:    (TB, 1)        f32 — 1000 * timestep for this row tile
        # freq_ref: (1, half_dim)  f32 — exp(-j * log(10000)/(half_dim-1))
        # o_ref:    (TB, dim)          — [sin(emb) | cos(emb)]
        emb = x_ref[...] * freq_ref[...]           # (TB, half_dim): 1 mul/elem
        if split_halves:
            # half_dim % 128 == 0: lane-aligned half writes, direct sin & cos.
            o_ref[:, :half_dim] = jnp.sin(emb).astype(o_ref.dtype)
            o_ref[:, half_dim:] = jnp.cos(emb).astype(o_ref.dtype)
        else:
            # TODO(synk): for dim < 128 the store is lane-masked (dim/128
            # utilization); pack 128//dim rows per lane group for production
            # use of tiny dims. Kept simple here — small dims are demo-only.
            o_ref[...] = jnp.concatenate(
                [jnp.sin(emb), jnp.cos(emb)], axis=-1
            ).astype(o_ref.dtype)

    return kernel


def _tile_rows(b: int, dim: int, block_rows) -> int:
    # Size the row tile by bytes (~4 MiB per pipeline step), counting the
    # lane-padded (TB, 1) x block at 512 B/row, not a fixed row count.
    bytes_per_row = dim * 4 + 512
    tb = (4 * 1024 * 1024) // bytes_per_row
    tb = max(8, min(tb, 8192))
    if block_rows is not None:
        tb = min(tb, max(8, int(block_rows)))
    if b >= 16:
        # Guarantee >= 2 grid steps so dimension_semantics=("parallel",) can
        # actually shard row tiles across both TensorCores on v7x.
        tb = min(tb, _round_up(-(-b // 2), 8))
    else:
        tb = min(tb, _round_up(b, 8))
    return _round_up(tb, 8)


@functools.partial(jax.jit, static_argnames=("dim", "block_rows", "out_dtype"))
def sinusoidal_pos_emb(x: jax.Array, dim: int, block_rows=None,
                       out_dtype=jnp.float32) -> jax.Array:
    """Pallas equivalent of SinusoidalPosEmb(dim)(x). x: (B,) -> (B, dim)."""
    assert dim % 2 == 0, "dim must be even"
    assert dim >= 4, "dim must be >= 4 (half_dim - 1 must be nonzero)"

    b = x.shape[0]
    half_dim = dim // 2

    # Tiny constant row; constant-folded by XLA once (no per-step iota/exp).
    scale = math.log(10000.0) / (half_dim - 1)
    freq_row = jnp.exp(
        -scale * jnp.arange(half_dim, dtype=jnp.float32)
    ).reshape(1, half_dim)

    # Fold the 1000x factor into x (matches the reference multiply order
    # (1000 * x) * freqs exactly); (B,) elementwise, negligible.
    x2 = (1000.0 * x.astype(jnp.float32)).reshape(b, 1)

    tb = _tile_rows(b, dim, block_rows)
    grid = (pl.cdiv(b, tb),)

    kernel = _make_kernel(half_dim, split_halves=(half_dim % 128 == 0))

    return pl.pallas_call(
        kernel,
        out_shape=jax.ShapeDtypeStruct((b, dim), out_dtype),
        grid_spec=pltpu.PrefetchScalarGridSpec(
            num_scalar_prefetch=0,
            grid=grid,
            in_specs=[
                pl.BlockSpec((tb, 1), lambda i: (i, 0)),          # x rows
                pl.BlockSpec((1, half_dim), lambda i: (0, 0)),    # freq row
            ],
            out_specs=pl.BlockSpec((tb, dim), lambda i: (i, 0)),
        ),
        compiler_params=pltpu.CompilerParams(
            dimension_semantics=("parallel",),   # batch tiles independent
        ),
    )(x2, freq_row)


def _reference(x: jax.Array, dim: int) -> jax.Array:
    # Pure-JAX reference matching the PyTorch forward exactly.
    half_dim = dim // 2
    emb = math.log(10000.0) / (half_dim - 1)
    emb = jnp.exp(jnp.arange(half_dim, dtype=jnp.float32) * -emb)
    emb = 1000.0 * x.astype(jnp.float32)[:, None] * emb[None, :]
    return jnp.concatenate([jnp.sin(emb), jnp.cos(emb)], axis=-1)


if __name__ == "__main__":
    key = jax.random.PRNGKey(0)

    # Path 1: lane-aligned dim (half_dim % 128 == 0), ragged batch
    # (B not a multiple of the tile -> exercises the clipped last block,
    #  and B >= 16 -> >= 2 grid steps).
    B1, DIM1 = 50, 256
    x1 = jax.random.uniform(key, (B1,), dtype=jnp.float32)  # timesteps in [0,1)
    out1 = jax.block_until_ready(sinusoidal_pos_emb(x1, DIM1))
    ref1 = _reference(x1, DIM1)
    assert out1.shape == (B1, DIM1) and out1.dtype == jnp.float32
    # Tolerance covers sin/cos implementation differences (Mosaic vs XLA) at
    # arguments up to ~1e3; math is now identical (direct cos, same mul order).
    assert jnp.allclose(out1, ref1, atol=1e-3, rtol=1e-3), "mismatch (dim=256)"

    # Path 2: small-dim fallback (concat form), demo-sized.
    B2, DIM2 = 8, 32
    x2 = jax.random.uniform(jax.random.PRNGKey(0), (B2,), dtype=jnp.float32)
    out2 = jax.block_until_ready(sinusoidal_pos_emb(x2, DIM2))
    ref2 = _reference(x2, DIM2)
    assert out2.shape == (B2, DIM2) and out2.dtype == jnp.float32
    assert jnp.allclose(out2, ref2, atol=1e-3, rtol=1e-3), "mismatch (dim=32)"

    print("KERNEL_OK")
</pallas_src>

<mosaic_0001>
module attributes {stable_mosaic.version = 11 : i64} {
  func.func @kernel(%arg0: i32, %arg1: memref<32x1xf32, #tpu.memory_space<vmem>>, %arg2: memref<1x128xf32, #tpu.memory_space<vmem>>, %arg3: memref<32x256xf32, #tpu.memory_space<vmem>>) attributes {dimension_semantics = [#tpu.dimension_semantics<parallel>], iteration_bounds = array<i64: 2>, scalar_prefetch = 0 : i64, scratch_operands = 0 : i64, tpu.core_type = #tpu.core_type<tc>, window_params = [{transform_indices = @transform_0, window_bounds = array<i64: 32, 1>}, {pipeline_mode = #tpu.pipeline_mode<synchronous>, transform_indices = @transform_1, window_bounds = array<i64: 1, 128>}, {transform_indices = @transform_2, window_bounds = array<i64: 32, 256>}]} {
    %c0 = arith.constant 0 : index
    %c0_0 = arith.constant 0 : index
    %0 = vector.load %arg1[%c0, %c0_0] : memref<32x1xf32, #tpu.memory_space<vmem>>, vector<32x1xf32>
    %c0_1 = arith.constant 0 : index
    %c0_2 = arith.constant 0 : index
    %1 = vector.load %arg2[%c0_1, %c0_2] : memref<1x128xf32, #tpu.memory_space<vmem>>, vector<1x128xf32>
    %2 = vector.broadcast %0 : vector<32x1xf32> to vector<32x128xf32>
    %3 = vector.broadcast %1 : vector<1x128xf32> to vector<32x128xf32>
    %4 = arith.mulf %2, %3 : vector<32x128xf32>
    %5 = math.sin %4 : vector<32x128xf32>
    %c0_3 = arith.constant 0 : index
    %c0_4 = arith.constant 0 : index
    %6 = vector.load %arg3[%c0_3, %c0_4] : memref<32x256xf32, #tpu.memory_space<vmem>>, vector<32x128xf32>
    tpu.vector_store %arg3[%c0_3, %c0_4], %5 {strides = array<i32>} : memref<32x256xf32, #tpu.memory_space<vmem>>, vector<32x128xf32>,
    %7 = math.cos %4 : vector<32x128xf32>
    %c0_5 = arith.constant 0 : index
    %c128 = arith.constant 128 : index
    %8 = vector.load %arg3[%c0_5, %c128] : memref<32x256xf32, #tpu.memory_space<vmem>>, vector<32x128xf32>
    tpu.vector_store %arg3[%c0_5, %c128], %7 {strides = array<i32>} : memref<32x256xf32, #tpu.memory_space<vmem>>, vector<32x128xf32>,
    return
  }
  func.func @transform_0(%arg0: i32) -> (i32, i32) {
    %c0_i32 = arith.constant 0 : i32
    %c0_i32_0 = arith.constant 0 : i32
    return %arg0, %c0_i32 : i32, i32
  }
  func.func @transform_1(%arg0: i32) -> (i32, i32) {
    %c0_i32 = arith.constant 0 : i32
    %c0_i32_0 = arith.constant 0 : i32
    %c0_i32_1 = arith.constant 0 : i32
    return %c0_i32, %c0_i32_0 : i32, i32
  }
  func.func @transform_2(%arg0: i32) -> (i32, i32) {
    %c0_i32 = arith.constant 0 : i32
    %c0_i32_0 = arith.constant 0 : i32
    return %arg0, %c0_i32 : i32, i32
  }
}

</mosaic_0001>

<llo_original>
// kernel: sinusoidal_pos_emb.1
$region0: #{sinusoidal_pos_emb.1}
  #allocation0 [shape = 'u32[]', space=smem, size = 0x4, offset = 0x4, fixed_abs, tag = 'smem constant byte address 0x4 - core index']
  #allocation1 [shape = 'u32[144,128]{1,0:T(1,128)}', space=vmem, size = 0x12000, scoped, tag = 'internal scratch']
  %s0 = inlined_call_operand.vmem [shape: f32[50,1], index: 0, kind: input, shape index: {}]
  %s1 = inlined_call_operand.vmem [shape: f32[1,128], index: 1, kind: input, shape index: {}]
  %s2 = inlined_call_operand.hbm [shape: f32[50,256], index: 2, kind: output, shape index: {}]
  %s3 = sld [smem:[#allocation0]]
  $region41: #{sinusoidal_pos_emb.1} parent=0
    _
  %s5 = ssub.s32 1, %s3
  %s6 = scalar_select 0, %s5, %s3
  $region1: #{sinusoidal_pos_emb.1} parent=0
    #allocation2 [shape = 'u8[65536]{0}', space=vmem, size = 0x10000, scoped, tag = 'output window, operand 0']
    #allocation3 [shape = 's32[2]{0}', space=sflag, size = 0x8, scoped, tag = 'scoped memory for sinusoidal_pos_emb.1']
    %7 = vsyncpa [#allocation3], 0
    %s8 = scalar_lea.sflag [#allocation3], 1
    %9 = vsyncpa %s8, 0
    loop: start=0, step=1, limit=4
    $region2: #{sinusoidal_pos_emb.1} parent=1 // loop_pre_header
      _
    $region3: #{sinusoidal_pos_emb.1} parent=1 // loop_header
      %s11 = sphi 0, %s15
      %p12 = scmp.ge.s32.totalorder %s11, 4
      %s21 = sphi 0, %s23
      %s24 = sphi 0, %s21
      %s25 = sphi 0, %s24
      %s41 = sphi 0, %s25
      %s45 = sphi 0, %s45
      %s47 = sphi 0, %s45
      %s48 = sphi 0, %s47
      %s62 = sphi 0, %s48
      %s68 = sphi 0, %s70
      %s71 = sphi 0, %s68
      %s72 = sphi 0, %s71
      %s88 = sphi 0, %s72
    $region4: #{sinusoidal_pos_emb.1} parent=1 // loop_header_branch
      %14 = sbr.rel (%p12) target = $region8
    $region5: #{sinusoidal_pos_emb.1} parent=1 // loop_body
      %s16 = ssub.s32 %s11, 1
      %s17 = ssub.s32 %s11, 2
      %s18 = sadd.s32 %s11, 1
      %s19 = ssub.s32 %s11, %s18
      %p20 = scmp.eq.s32.totalorder %s19, 0
      %s22 = sadd.s32 %s21, 1
      %s23 = scalar_select %p20, %s21, %s22
      %p26 = pneg %p20
      %p27 = scmp.eq.s32.totalorder %s11, 1
      %p28 = por %p26, %p27
      %p29 = scmp.ne.s32.totalorder %s21, %s24
      %p30 = scmp.eq.s32.totalorder %s11, 0
      %p31 = por %p29, %p30
      %p32 = scmp.ne.s32.totalorder %s21, %s24
      %p33 = scmp.eq.s32.totalorder %s16, 1
      %p34 = por %p32, %p33
      %p35 = scmp.ne.s32.totalorder %s24, %s25
      %p36 = scmp.eq.s32.totalorder %s16, 0
      %p37 = por %p35, %p36
      %p38 = scmp.ne.s32.totalorder %s24, %s25
      %p39 = scmp.eq.s32.totalorder %s17, 1
      %p40 = por %p38, %p39
      %p42 = scmp.ne.s32.totalorder %s25, %s41
      %p43 = scmp.eq.s32.totalorder %s17, 0
      %p44 = por %p42, %p43
      %s46 = sadd.s32 %s45, 1
      %p49 = scmp.eq.s32.totalorder %s11, 1
      %p50 = scmp.ne.s32.totalorder %s45, %s47
      %p51 = scmp.eq.s32.totalorder %s11, 0
      %p52 = por %p50, %p51
      %p53 = scmp.ne.s32.totalorder %s45, %s47
      %p54 = scmp.eq.s32.totalorder %s16, 1
      %p55 = por %p53, %p54
      %p56 = scmp.ne.s32.totalorder %s47, %s48
      %p57 = scmp.eq.s32.totalorder %s16, 0
      %p58 = por %p56, %p57
      %p59 = scmp.ne.s32.totalorder %s47, %s48
      %p60 = scmp.eq.s32.totalorder %s17, 1
      %p61 = por %p59, %p60
      %p63 = scmp.ne.s32.totalorder %s48, %s62
      %p64 = scmp.eq.s32.totalorder %s17, 0
      %p65 = por %p63, %p64
      %s66 = ssub.s32 %s11, %s18
      %p67 = scmp.eq.s32.totalorder %s66, 0
      %s69 = sadd.s32 %s68, 1
      %s70 = scalar_select %p67, %s68, %s69
      %p73 = pneg %p67
      %p74 = scmp.eq.s32.totalorder %s11, 1
      %p75 = por %p73, %p74
      %p76 = scmp.ne.s32.totalorder %s68, %s71
      %p77 = scmp.eq.s32.totalorder %s11, 0
      %p78 = por %p76, %p77
      %p79 = scmp.ne.s32.totalorder %s68, %s71
      %p80 = scmp.eq.s32.totalorder %s16, 1
      %p81 = por %p79, %p80
      %p82 = scmp.ne.s32.totalorder %s71, %s72
      %p83 = scmp.eq.s32.totalorder %s16, 0
      %p84 = por %p82, %p83
      %p85 = scmp.ne.s32.totalorder %s71, %s72
      %p86 = scmp.eq.s32.totalorder %s17, 1
      %p87 = por %p85, %p86
      %p89 = scmp.ne.s32.totalorder %s72, %s88
      %p90 = scmp.eq.s32.totalorder %s17, 0
      %p91 = por %p89, %p90
      %p92 = scmp.le.s32.totalorder 1, %s11
      %p93 = scmp.lt.s32.totalorder %s11, 3
      %p94 = pnand %p92, %p93
      %p95 = pneg %p94
      // Predicated region
      $region9: #{sinusoidal_pos_emb.1} parent=5 // pred_check
        _
      $region10: #{sinusoidal_pos_emb.1} parent=5 // pred_check_branch
        %97 = sbr.rel (%p94) target = $region12
      $region11: #{sinusoidal_pos_emb.1} parent=5 // pred_region
        %s98 = ssub.s32 %s11, 1
        // Predicated region
        $region13: #{sinusoidal_pos_emb.1} parent=11 // pred_check
          %p99 = pneg %p58
        $region14: #{sinusoidal_pos_emb.1} parent=11 // pred_check_branch
          %101 = sbr.rel (%p99) target = $region16
        $region15: #{sinusoidal_pos_emb.1} parent=11 // pred_region
          _
        $region16: #{sinusoidal_pos_emb.1} parent=11 // pred_fallthru
          _
      $region12: #{sinusoidal_pos_emb.1} parent=5 // pred_fallthru
        _
      %p102 = scmp.lt.s32.totalorder %s11, 2
      // Predicated region
      $region17: #{sinusoidal_pos_emb.1} parent=5 // pred_check
        %p103 = pneg %p102
      $region18: #{sinusoidal_pos_emb.1} parent=5 // pred_check_branch
        %105 = sbr.rel (%p103) target = $region20
      $region19: #{sinusoidal_pos_emb.1} parent=5 // pred_region
        // Predicated region
        $region21: #{sinusoidal_pos_emb.1} parent=19 // pred_check
          %p106 = pneg %p31
        $region22: #{sinusoidal_pos_emb.1} parent=19 // pred_check_branch
          %108 = sbr.rel (%p106) target = $region24
        $region23: #{sinusoidal_pos_emb.1} parent=19 // pred_region
          %s109 = smul.u32 4, %s11
          %s110 = ssub.s32 7, %s109
          %p111 = scmp.lt.s32.totalorder %s110, 4
          %s112 = scalar_select %p111, %s110, 4
          %s113 = smul.u32 128, %s112
          %p114 = scmp.lt.s32.totalorder %s109, 6
          %s115 = scalar_select %p114, %s109, 6
          %s116 = smul.addr %s115, 8
          %s117 = scalar_lea.vmem %s0, %s116
          %s118 = smul.u32 4, %s11
          %s119 = ssub.s32 7, %s118
          %p120 = scmp.lt.s32.totalorder %s119, 4
          %s121 = scalar_select %p120, %s119, 4
          %s122 = smul.u32 128, %s121
        $region24: #{sinusoidal_pos_emb.1} parent=19 // pred_fallthru
          _
      $region20: #{sinusoidal_pos_emb.1} parent=5 // pred_fallthru
        _
      %p123 = scmp.le.s32.totalorder 1, %s11
      %p124 = scmp.lt.s32.totalorder %s11, 3
      %p125 = pnand %p123, %p124
      %p126 = pneg %p125
      // Predicated region
      $region25: #{sinusoidal_pos_emb.1} parent=5 // pred_check
        _
      $region26: #{sinusoidal_pos_emb.1} parent=5 // pred_check_branch
        %128 = sbr.rel (%p125) target = $region28
      $region27: #{sinusoidal_pos_emb.1} parent=5 // pred_region
        %s129 = ssub.s32 %s11, 1
        %s130 = smul.u32 4, %s16
        %s131 = ssub.s32 7, %s130
        %p132 = scmp.lt.s32.totalorder %s131, 4
        %s133 = scalar_select %p132, %s131, 4
        %s134 = smul.u32 128, %s133
        %p135 = scmp.lt.s32.totalorder %s130, 6
        %s136 = scalar_select %p135, %s130, 6
        %s137 = smul.addr %s136, 8
        %s138 = scalar_lea.vmem %s0, %s137
        %p139 = pneg %p37
        %p140 = pneg %p34
        %p141 = pneg %p58
        %p142 = pneg %p55
        %p143 = pneg %p84
        %p144 = pneg %p81
        %s145 = sand.u32 %s71, 1
        %s146 = scalar_lea.sflag [#allocation3], %s145
        %s147 = sand.u32 %s71, 1
        %s148 = smul.addr %s147, 64
        %s149 = scalar_lea.vmem [#allocation2], %s148
        %s150 = smul.u32 4, %s16
        %s151 = ssub.s32 7, %s150
        %p152 = scmp.lt.s32.totalorder %s151, 4
        %s153 = scalar_select %p152, %s151, 4
        %s154 = smul.u32 128, %s153
        %p155 = scmp.lt.s32.totalorder %s150, 6
        %s156 = scalar_select %p155, %s150, 6
        %s157 = smul.addr %s156, 8
        %s158 = scalar_lea.vmem %s0, %s157
        %s159 = smul.u32 4, %s16
        %s160 = ssub.s32 7, %s159
        %p161 = scmp.lt.s32.totalorder %s160, 4
        %s162 = scalar_select %p161, %s160, 4
        %s163 = smul.u32 128, %s162
        %s164 = smul.u32 4, %s16
        %s165 = ssub.s32 7, %s164
        %p166 = scmp.lt.s32.totalorder %s165, 4
        %s167 = scalar_select %p166, %s165, 4
        %s168 = smul.u32 128, %s167
        %s169 = smul.u32 %s168, 2
        %v170 = vld [vmem:[%s158] sm:$0xff]
        %v171 = vld [vmem:[%s158 + $0x8] sm:$0xff]
        %v172 = vld [vmem:[%s158 + $0x10] sm:$0xff]
        %v173 = vld [vmem:[%s158 + $0x18] sm:$0xff]
        %v174 = vld [vmem:[%s1] sm:$0x1]
        %176 = vset.pattern.permute.xlu0 0
        %177 = vperm.xlu0 %176, %v170
        %v178 = vpop.permute.xlu0 %177
        %181 = vset.pattern.permute.xlu0 0
        %182 = vperm.xlu0 %181, %v171
        %v183 = vpop.permute.xlu0 %182
        %186 = vset.pattern.permute.xlu0 0
        %187 = vperm.xlu0 %186, %v172
        %v188 = vpop.permute.xlu0 %187
        %191 = vset.pattern.permute.xlu0 0
        %192 = vperm.xlu0 %191, %v173
        %v193 = vpop.permute.xlu0 %192
        %v196 = vlaneseq
        %v197 = vshrl.u32 %v196, 7
        %v198 = vsub.s32 0, %v197
        %v199 = vrot.slane %v174, %v198
        %v201 = vmul.f32 %v178, %v199
        %v202 = vmul.f32 %v183, %v199
        %v203 = vmul.f32 %v188, %v199
        %v204 = vmul.f32 %v193, %v199
        %v205 = vand.u32 2147483647, %v201
        %vm206 = vcmp.le.f32.partialorder %v205, 0.7853982
        %vm207 = vcmp.lt.s32.totalorder %v201, 0
        %v208 = vand.u32 %v201, 2139095040
        %v209 = vshrl.u32 %v208, 23
        %v210 = vsub.s32 %v209, 127
        %v211 = vand.u32 2147483647, %v201
        %v212 = vand.u32 %v211, 8388607
        %v213 = vor.u32 %v212, 8388608
        %v214 = vsub.s32 0, %v213
        %v215 = vadd.s32 %v210, 1
        %vm216 = vcmp.gt.s32.totalorder %v215, 0
        %v217 = vsel %vm216, %v215, 0
        %v218 = vshrl.u32 %v217, 5
        %v219 = vand.u32 %v217, 31
        %v220 = vsub.s32 32, %v219
        %v221 = vshrl.u32 683565275, %v220
        %v222 = vshll.u32 683565275, %v219
        %v223 = vshrl.u32 2475754826, %v220
        %v224 = vor.u32 %v222, %v223
        %v225 = vshll.u32 2475754826, %v219
        %v226 = vshrl.u32 2131351028, %v220
        %v227 = vor.u32 %v225, %v226
        %v228 = vshll.u32 2131351028, %v219
        %v229 = vshrl.u32 2102212464, %v220
        %v230 = vor.u32 %v228, %v229
        %v231 = vshll.u32 2102212464, %v219
        %v232 = vshrl.u32 920167782, %v220
        %v233 = vor.u32 %v231, %v232
        %v234 = vshll.u32 920167782, %v219
        %v235 = vshrl.u32 1326507024, %v220
        %v236 = vor.u32 %v234, %v235
        %vm237 = vcmp.lt.s32.totalorder %v218, 1
        %vm238 = vcmp.lt.s32.totalorder %v218, 2
        %vm239 = vcmp.lt.s32.totalorder %v218, 3
        %vm240 = vcmp.lt.s32.totalorder %v218, 4
        %v241 = vsel %vm237, %v221, %v224
        %v242 = vsel %vm240, %v230, 2102212464
        %v243 = vsel %vm239, %v227, %v242
        %v244 = vsel %vm238, %v241, %v243
        %v245 = vsel %vm237, %v224, %v227
        %v246 = vsel %vm240, %v233, 920167782
        %v247 = vsel %vm239, %v230, %v246
        %v248 = vsel %vm238, %v245, %v247
        %v249 = vsel %vm237, %v227, %v230
        %v250 = vsel %vm240, %v236, 1326507024
        %v251 = vsel %vm239, %v233, %v250
        %v252 = vsel %vm238, %v249, %v251
        %v253 = vshll.u32 %v213, 8
        %v254 = vmul.u32.u64.compose %v253, %v252
        %v255 = vextract.low.u32 %v254
        %v256 = vextract.high.u32 %v254
        %v257 = vmul.u32.u64.compose %v253, %v248
        %v258 = vextract.low.u32 %v257
        %v259 = vextract.high.u32 %v257
        %v260 = vmul.u32 %v253, %v244
        %v261 = vadd.s32 %v256, %v258
        %vm262 = vc.u32 %v256, %v258
        %v263 = vadd.s32 %v259, 1
        %v264 = vsel %vm262, %v263, %v259
        %v265 = vadd.s32 %v260, %v264
        %v266 = vadd.s32 %v265, 536870912
        %v267 = vshrl.u32 %v266, 30
        %v268 = vshll.u32 %v267, 30
        %v269 = vsub.s32 %v265, %v268
        %vm270 = vcmp.lt.s32.totalorder %v269, 0
        %v271 = vsub.s32 0, %v269
        %v272 = vsel %vm270, %v271, %v269
        %v273 = vclz %v272
        %v274 = vsub.s32 %v273, 2
        %vm275 = vcmp.gt.s32.totalorder 0, %v274
        %v276 = vsel %vm275, 0, %v274
        %v277 = vsub.s32 32, %v276
        %v278 = vshll.u32 %v269, %v276
        %v279 = vshrl.u32 %v261, %v277
        %v280 = vor.u32 %v278, %v279
        %v281 = vsub.s32 4294967266, %v276
        %v282 = vadd.s32 %v281, 127
        %v283 = vshll.u32 %v282, 23
        %v284 = vor.u32 4788187, %v283
        %v285 = vand.u32 2147483647, %v284
        %v287 = vcvt.s32.f32 %v280
        %v288 = vmul.f32 %v287, %v285
        %v289 = vxor.u32 %v288, 2147483648
        %v290 = vsel %vm207, %v289, %v288
        %v291 = vsub.s32 4, %v267
        %v292 = vsel %vm207, %v291, %v267
        %v293 = vsel %vm206, %v201, %v290
        %v294 = vsel %vm206, 0, %v292
        %v295 = vcosq.f32.pop %v293
        %v296 = vsinq.f32.pop %v293
        %vm297 = vweird.f32 %v201
        %v298 = vadd.s32 %v294, 3
        %v299 = vand.u32 %v298, 3
        %vm300 = vcmp.lt.s32.totalorder %v299, 2
        %vm301 = vcmp.eq.s32.totalorder %v299, 0
        %v302 = vxor.u32 %v296, 2147483648
        %v303 = vsel %vm301, %v295, %v302
        %vm304 = vcmp.eq.s32.totalorder %v299, 2
        %v305 = vxor.u32 %v295, 2147483648
        %v306 = vsel %vm304, %v305, %v296
        %v307 = vsel %vm300, %v303, %v306
        %v308 = vsel %vm297, nan, %v307
        %v309 = vand.u32 2147483647, %v202
        %vm310 = vcmp.le.f32.partialorder %v309, 0.7853982
        %vm311 = vcmp.lt.s32.totalorder %v202, 0
        %v312 = vand.u32 %v202, 2139095040
        %v313 = vshrl.u32 %v312, 23
        %v314 = vsub.s32 %v313, 127
        %v315 = vand.u32 2147483647, %v202
        %v316 = vand.u32 %v315, 8388607
        %v317 = vor.u32 %v316, 8388608
        %v318 = vsub.s32 0, %v317
        %v319 = vadd.s32 %v314, 1
        %vm320 = vcmp.gt.s32.totalorder %v319, 0
        %v321 = vsel %vm320, %v319, 0
        %v322 = vshrl.u32 %v321, 5
        %v323 = vand.u32 %v321, 31
        %v324 = vsub.s32 32, %v323
        %v325 = vshrl.u32 683565275, %v324
        %v326 = vshll.u32 683565275, %v323
        %v327 = vshrl.u32 2475754826, %v324
        %v328 = vor.u32 %v326, %v327
        %v329 = vshll.u32 2475754826, %v323
        %v330 = vshrl.u32 2131351028, %v324
        %v331 = vor.u32 %v329, %v330
        %v332 = vshll.u32 2131351028, %v323
        %v333 = vshrl.u32 2102212464, %v324
        %v334 = vor.u32 %v332, %v333
        %v335 = vshll.u32 2102212464, %v323
        %v336 = vshrl.u32 920167782, %v324
        %v337 = vor.u32 %v335, %v336
        %v338 = vshll.u32 920167782, %v323
        %v339 = vshrl.u32 1326507024, %v324
        %v340 = vor.u32 %v338, %v339
        %vm341 = vcmp.lt.s32.totalorder %v322, 1
        %vm342 = vcmp.lt.s32.totalorder %v322, 2
        %vm343 = vcmp.lt.s32.totalorder %v322, 3
        %vm344 = vcmp.lt.s32.totalorder %v322, 4
        %v345 = vsel %vm341, %v325, %v328
        %v346 = vsel %vm344, %v334, 2102212464
        %v347 = vsel %vm343, %v331, %v346
        %v348 = vsel %vm342, %v345, %v347
        %v349 = vsel %vm341, %v328, %v331
        %v350 = vsel %vm344, %v337, 920167782
        %v351 = vsel %vm343, %v334, %v350
        %v352 = vsel %vm342, %v349, %v351
        %v353 = vsel %vm341, %v331, %v334
        %v354 = vsel %vm344, %v340, 1326507024
        %v355 = vsel %vm343, %v337, %v354
        %v356 = vsel %vm342, %v353, %v355
        %v357 = vshll.u32 %v317, 8
        %v358 = vmul.u32.u64.compose %v357, %v356
        %v359 = vextract.low.u32 %v358
        %v360 = vextract.high.u32 %v358
        %v361 = vmul.u32.u64.compose %v357, %v352
        %v362 = vextract.low.u32 %v361
        %v363 = vextract.high.u32 %v361
        %v364 = vmul.u32 %v357, %v348
        %v365 = vadd.s32 %v360, %v362
        %vm366 = vc.u32 %v360, %v362
        %v367 = vadd.s32 %v363, 1
        %v368 = vsel %vm366, %v367, %v363
        %v369 = vadd.s32 %v364, %v368
        %v370 = vadd.s32 %v369, 536870912
        %v371 = vshrl.u32 %v370, 30
        %v372 = vshll.u32 %v371, 30
        %v373 = vsub.s32 %v369, %v372
        %vm374 = vcmp.lt.s32.totalorder %v373, 0
        %v375 = vsub.s32 0, %v373
        %v376 = vsel %vm374, %v375, %v373
        %v377 = vclz %v376
        %v378 = vsub.s32 %v377, 2
        %vm379 = vcmp.gt.s32.totalorder 0, %v378
        %v380 = vsel %vm379, 0, %v378
        %v381 = vsub.s32 32, %v380
        %v382 = vshll.u32 %v373, %v380
        %v383 = vshrl.u32 %v365, %v381
        %v384 = vor.u32 %v382, %v383
        %v385 = vsub.s32 4294967266, %v380
        %v386 = vadd.s32 %v385, 127
        %v387 = vshll.u32 %v386, 23
        %v388 = vor.u32 4788187, %v387
        %v389 = vand.u32 2147483647, %v388
        %v391 = vcvt.s32.f32 %v384
        %v392 = vmul.f32 %v391, %v389
        %v393 = vxor.u32 %v392, 2147483648
        %v394 = vsel %vm311, %v393, %v392
        %v395 = vsub.s32 4, %v371
        %v396 = vsel %vm311, %v395, %v371
        %v397 = vsel %vm310, %v202, %v394
        %v398 = vsel %vm310, 0, %v396
        %v399 = vcosq.f32.pop %v397
        %v400 = vsinq.f32.pop %v397
        %vm401 = vweird.f32 %v202
        %v402 = vadd.s32 %v398, 3
        %v403 = vand.u32 %v402, 3
        %vm404 = vcmp.lt.s32.totalorder %v403, 2
        %vm405 = vcmp.eq.s32.totalorder %v403, 0
        %v406 = vxor.u32 %v400, 2147483648
        %v407 = vsel %vm405, %v399, %v406
        %vm408 = vcmp.eq.s32.totalorder %v403, 2
        %v409 = vxor.u32 %v399, 2147483648
        %v410 = vsel %vm408, %v409, %v400
        %v411 = vsel %vm404, %v407, %v410
        %v412 = vsel %vm401, nan, %v411
        %v413 = vand.u32 2147483647, %v203
        %vm414 = vcmp.le.f32.partialorder %v413, 0.7853982
        %vm415 = vcmp.lt.s32.totalorder %v203, 0
        %v416 = vand.u32 %v203, 2139095040
        %v417 = vshrl.u32 %v416, 23
        %v418 = vsub.s32 %v417, 127
        %v419 = vand.u32 2147483647, %v203
        %v420 = vand.u32 %v419, 8388607
        %v421 = vor.u32 %v420, 8388608
        %v422 = vsub.s32 0, %v421
        %v423 = vadd.s32 %v418, 1
        %vm424 = vcmp.gt.s32.totalorder %v423, 0
        %v425 = vsel %vm424, %v423, 0
        %v426 = vshrl.u32 %v425, 5
        %v427 = vand.u32 %v425, 31
        %v428 = vsub.s32 32, %v427
        %v429 = vshrl.u32 683565275, %v428
        %v430 = vshll.u32 683565275, %v427
        %v431 = vshrl.u32 2475754826, %v428
        %v432 = vor.u32 %v430, %v431
        %v433 = vshll.u32 2475754826, %v427
        %v434 = vshrl.u32 2131351028, %v428
        %v435 = vor.u32 %v433, %v434
        %v436 = vshll.u32 2131351028, %v427
        %v437 = vshrl.u32 2102212464, %v428
        %v438 = vor.u32 %v436, %v437
        %v439 = vshll.u32 2102212464, %v427
        %v440 = vshrl.u32 920167782, %v428
        %v441 = vor.u32 %v439, %v440
        %v442 = vshll.u32 920167782, %v427
        %v443 = vshrl.u32 1326507024, %v428
        %v444 = vor.u32 %v442, %v443
        %vm445 = vcmp.lt.s32.totalorder %v426, 1
        %vm446 = vcmp.lt.s32.totalorder %v426, 2
        %vm447 = vcmp.lt.s32.totalorder %v426, 3
        %vm448 = vcmp.lt.s32.totalorder %v426, 4
        %v449 = vsel %vm445, %v429, %v432
        %v450 = vsel %vm448, %v438, 2102212464
        %v451 = vsel %vm447, %v435, %v450
        %v452 = vsel %vm446, %v449, %v451
        %v453 = vsel %vm445, %v432, %v435
        %v454 = vsel %vm448, %v441, 920167782
        %v455 = vsel %vm447, %v438, %v454
        %v456 = vsel %vm446, %v453, %v455
        %v457 = vsel %vm445, %v435, %v438
        %v458 = vsel %vm448, %v444, 1326507024
        %v459 = vsel %vm447, %v441, %v458
        %v460 = vsel %vm446, %v457, %v459
        %v461 = vshll.u32 %v421, 8
        %v462 = vmul.u32.u64.compose %v461, %v460
        %v463 = vextract.low.u32 %v462
        %v464 = vextract.high.u32 %v462
        %v465 = vmul.u32.u64.compose %v461, %v456
        %v466 = vextract.low.u32 %v465
        %v467 = vextract.high.u32 %v465
        %v468 = vmul.u32 %v461, %v452
        %v469 = vadd.s32 %v464, %v466
        %vm470 = vc.u32 %v464, %v466
        %v471 = vadd.s32 %v467, 1
        %v472 = vsel %vm470, %v471, %v467
        %v473 = vadd.s32 %v468, %v472
        %v474 = vadd.s32 %v473, 536870912
        %v475 = vshrl.u32 %v474, 30
        %v476 = vshll.u32 %v475, 30
        %v477 = vsub.s32 %v473, %v476
        %vm478 = vcmp.lt.s32.totalorder %v477, 0
        %v479 = vsub.s32 0, %v477
        %v480 = vsel %vm478, %v479, %v477
        %v481 = vclz %v480
        %v482 = vsub.s32 %v481, 2
        %vm483 = vcmp.gt.s32.totalorder 0, %v482
        %v484 = vsel %vm483, 0, %v482
        %v485 = vsub.s32 32, %v484
        %v486 = vshll.u32 %v477, %v484
        %v487 = vshrl.u32 %v469, %v485
        %v488 = vor.u32 %v486, %v487
        %v489 = vsub.s32 4294967266, %v484
        %v490 = vadd.s32 %v489, 127
        %v491 = vshll.u32 %v490, 23
        %v492 = vor.u32 4788187, %v491
        %v493 = vand.u32 2147483647, %v492
        %v495 = vcvt.s32.f32 %v488
        %v496 = vmul.f32 %v495, %v493
        %v497 = vxor.u32 %v496, 2147483648
        %v498 = vsel %vm415, %v497, %v496
        %v499 = vsub.s32 4, %v475
        %v500 = vsel %vm415, %v499, %v475
        %v501 = vsel %vm414, %v203, %v498
        %v502 = vsel %vm414, 0, %v500
        %v503 = vcosq.f32.pop %v501
        %v504 = vsinq.f32.pop %v501
        %vm505 = vweird.f32 %v203
        %v506 = vadd.s32 %v502, 3
        %v507 = vand.u32 %v506, 3
        %vm508 = vcmp.lt.s32.totalorder %v507, 2
        %vm509 = vcmp.eq.s32.totalorder %v507, 0
        %v510 = vxor.u32 %v504, 2147483648
        %v511 = vsel %vm509, %v503, %v510
        %vm512 = vcmp.eq.s32.totalorder %v507, 2
        %v513 = vxor.u32 %v503, 2147483648
        %v514 = vsel %vm512, %v513, %v504
        %v515 = vsel %vm508, %v511, %v514
        %v516 = vsel %vm505, nan, %v515
        %v517 = vand.u32 2147483647, %v204
        %vm518 = vcmp.le.f32.partialorder %v517, 0.7853982
        %vm519 = vcmp.lt.s32.totalorder %v204, 0
        %v520 = vand.u32 %v204, 2139095040
        %v521 = vshrl.u32 %v520, 23
        %v522 = vsub.s32 %v521, 127
        %v523 = vand.u32 2147483647, %v204
        %v524 = vand.u32 %v523, 8388607
        %v525 = vor.u32 %v524, 8388608
        %v526 = vsub.s32 0, %v525
        %v527 = vadd.s32 %v522, 1
        %vm528 = vcmp.gt.s32.totalorder %v527, 0
        %v529 = vsel %vm528, %v527, 0
        %v530 = vshrl.u32 %v529, 5
        %v531 = vand.u32 %v529, 31
        %v532 = vsub.s32 32, %v531
        %v533 = vshrl.u32 683565275, %v532
        %v534 = vshll.u32 683565275, %v531
        %v535 = vshrl.u32 2475754826, %v532
        %v536 = vor.u32 %v534, %v535
        %v537 = vshll.u32 2475754826, %v531
        %v538 = vshrl.u32 2131351028, %v532
        %v539 = vor.u32 %v537, %v538
        %v540 = vshll.u32 2131351028, %v531
        %v541 = vshrl.u32 2102212464, %v532
        %v542 = vor.u32 %v540, %v541
        %v543 = vshll.u32 2102212464, %v531
        %v544 = vshrl.u32 920167782, %v532
        %v545 = vor.u32 %v543, %v544
        %v546 = vshll.u32 920167782, %v531
        %v547 = vshrl.u32 1326507024, %v532
        %v548 = vor.u32 %v546, %v547
        %vm549 = vcmp.lt.s32.totalorder %v530, 1
        %vm550 = vcmp.lt.s32.totalorder %v530, 2
        %vm551 = vcmp.lt.s32.totalorder %v530, 3
        %vm552 = vcmp.lt.s32.totalorder %v530, 4
        %v553 = vsel %vm549, %v533, %v536
        %v554 = vsel %vm552, %v542, 2102212464
        %v555 = vsel %vm551, %v539, %v554
        %v556 = vsel %vm550, %v553, %v555
        %v557 = vsel %vm549, %v536, %v539
        %v558 = vsel %vm552, %v545, 920167782
        %v559 = vsel %vm551, %v542, %v558
        %v560 = vsel %vm550, %v557, %v559
        %v561 = vsel %vm549, %v539, %v542
        %v562 = vsel %vm552, %v548, 1326507024
        %v563 = vsel %vm551, %v545, %v562
        %v564 = vsel %vm550, %v561, %v563
        %v565 = vshll.u32 %v525, 8
        %v566 = vmul.u32.u64.compose %v565, %v564
        %v567 = vextract.low.u32 %v566
        %v568 = vextract.high.u32 %v566
        %v569 = vmul.u32.u64.compose %v565, %v560
        %v570 = vextract.low.u32 %v569
        %v571 = vextract.high.u32 %v569
        %v572 = vmul.u32 %v565, %v556
        %v573 = vadd.s32 %v568, %v570
        %vm574 = vc.u32 %v568, %v570
        %v575 = vadd.s32 %v571, 1
        %v576 = vsel %vm574, %v575, %v571
        %v577 = vadd.s32 %v572, %v576
        %v578 = vadd.s32 %v577, 536870912
        %v579 = vshrl.u32 %v578, 30
        %v580 = vshll.u32 %v579, 30
        %v581 = vsub.s32 %v577, %v580
        %vm582 = vcmp.lt.s32.totalorder %v581, 0
        %v583 = vsub.s32 0, %v581
        %v584 = vsel %vm582, %v583, %v581
        %v585 = vclz %v584
        %v586 = vsub.s32 %v585, 2
        %vm587 = vcmp.gt.s32.totalorder 0, %v586
        %v588 = vsel %vm587, 0, %v586
        %v589 = vsub.s32 32, %v588
        %v590 = vshll.u32 %v581, %v588
        %v591 = vshrl.u32 %v573, %v589
        %v592 = vor.u32 %v590, %v591
        %v593 = vsub.s32 4294967266, %v588
        %v594 = vadd.s32 %v593, 127
        %v595 = vshll.u32 %v594, 23
        %v596 = vor.u32 4788187, %v595
        %v597 = vand.u32 2147483647, %v596
        %v599 = vcvt.s32.f32 %v592
        %v600 = vmul.f32 %v599, %v597
        %v601 = vxor.u32 %v600, 2147483648
        %v602 = vsel %vm519, %v601, %v600
        %v603 = vsub.s32 4, %v579
        %v604 = vsel %vm519, %v603, %v579
        %v605 = vsel %vm518, %v204, %v602
        %v606 = vsel %vm518, 0, %v604
        %v607 = vcosq.f32.pop %v605
        %v608 = vsinq.f32.pop %v605
        %vm609 = vweird.f32 %v204
        %v610 = vadd.s32 %v606, 3
        %v611 = vand.u32 %v610, 3
        %vm612 = vcmp.lt.s32.totalorder %v611, 2
        %vm613 = vcmp.eq.s32.totalorder %v611, 0
        %v614 = vxor.u32 %v608, 2147483648
        %v615 = vsel %vm613, %v607, %v614
        %vm616 = vcmp.eq.s32.totalorder %v611, 2
        %v617 = vxor.u32 %v607, 2147483648
        %v618 = vsel %vm616, %v617, %v608
        %v619 = vsel %vm612, %v615, %v618
        %v620 = vsel %vm609, nan, %v619
        %621 = vst [vmem:[%s149] sm:$0xff] %v308
        %622 = vst [vmem:[%s149 + $0x10] sm:$0xff] %v412
        %623 = vst [vmem:[%s149 + $0x20] sm:$0xff] %v516
        %624 = vst [vmem:[%s149 + $0x30] sm:$0xff] %v620
        %v625 = vand.u32 2147483647, %v201
        %vm626 = vcmp.le.f32.partialorder %v625, 0.7853982
        %vm627 = vcmp.lt.s32.totalorder %v201, 0
        %v628 = vand.u32 %v201, 2139095040
        %v629 = vshrl.u32 %v628, 23
        %v630 = vsub.s32 %v629, 127
        %v631 = vand.u32 2147483647, %v201
        %v632 = vand.u32 %v631, 8388607
        %v633 = vor.u32 %v632, 8388608
        %v634 = vsub.s32 0, %v633
        %v635 = vadd.s32 %v630, 1
        %vm636 = vcmp.gt.s32.totalorder %v635, 0
        %v637 = vsel %vm636, %v635, 0
        %v638 = vshrl.u32 %v637, 5
        %v639 = vand.u32 %v637, 31
        %v640 = vsub.s32 32, %v639
        %v641 = vshrl.u32 683565275, %v640
        %v642 = vshll.u32 683565275, %v639
        %v643 = vshrl.u32 2475754826, %v640
        %v644 = vor.u32 %v642, %v643
        %v645 = vshll.u32 2475754826, %v639
        %v646 = vshrl.u32 2131351028, %v640
        %v647 = vor.u32 %v645, %v646
        %v648 = vshll.u32 2131351028, %v639
        %v649 = vshrl.u32 2102212464, %v640
        %v650 = vor.u32 %v648, %v649
        %v651 = vshll.u32 2102212464, %v639
        %v652 = vshrl.u32 920167782, %v640
        %v653 = vor.u32 %v651, %v652
        %v654 = vshll.u32 920167782, %v639
        %v655 = vshrl.u32 1326507024, %v640
        %v656 = vor.u32 %v654, %v655
        %vm657 = vcmp.lt.s32.totalorder %v638, 1
        %vm658 = vcmp.lt.s32.totalorder %v638, 2
        %vm659 = vcmp.lt.s32.totalorder %v638, 3
        %vm660 = vcmp.lt.s32.totalorder %v638, 4
        %v661 = vsel %vm657, %v641, %v644
        %v662 = vsel %vm660, %v650, 2102212464
        %v663 = vsel %vm659, %v647, %v662
        %v664 = vsel %vm658, %v661, %v663
        %v665 = vsel %vm657, %v644, %v647
        %v666 = vsel %vm660, %v653, 920167782
        %v667 = vsel %vm659, %v650, %v666
        %v668 = vsel %vm658, %v665, %v667
        %v669 = vsel %vm657, %v647, %v650
        %v670 = vsel %vm660, %v656, 1326507024
        %v671 = vsel %vm659, %v653, %v670
        %v672 = vsel %vm658, %v669, %v671
        %v673 = vshll.u32 %v633, 8
        %v674 = vmul.u32.u64.compose %v673, %v672
        %v675 = vextract.low.u32 %v674
        %v676 = vextract.high.u32 %v674
        %v677 = vmul.u32.u64.compose %v673, %v668
        %v678 = vextract.low.u32 %v677
        %v679 = vextract.high.u32 %v677
        %v680 = vmul.u32 %v673, %v664
        %v681 = vadd.s32 %v676, %v678
        %vm682 = vc.u32 %v676, %v678
        %v683 = vadd.s32 %v679, 1
        %v684 = vsel %vm682, %v683, %v679
        %v685 = vadd.s32 %v680, %v684
        %v686 = vadd.s32 %v685, 536870912
        %v687 = vshrl.u32 %v686, 30
        %v688 = vshll.u32 %v687, 30
        %v689 = vsub.s32 %v685, %v688
        %vm690 = vcmp.lt.s32.totalorder %v689, 0
        %v691 = vsub.s32 0, %v689
        %v692 = vsel %vm690, %v691, %v689
        %v693 = vclz %v692
        %v694 = vsub.s32 %v693, 2
        %vm695 = vcmp.gt.s32.totalorder 0, %v694
        %v696 = vsel %vm695, 0, %v694
        %v697 = vsub.s32 32, %v696
        %v698 = vshll.u32 %v689, %v696
        %v699 = vshrl.u32 %v681, %v697
        %v700 = vor.u32 %v698, %v699
        %v701 = vsub.s32 4294967266, %v696
        %v702 = vadd.s32 %v701, 127
        %v703 = vshll.u32 %v702, 23
        %v704 = vor.u32 4788187, %v703
        %v705 = vand.u32 2147483647, %v704
        %v707 = vcvt.s32.f32 %v700
        %v708 = vmul.f32 %v707, %v705
        %v709 = vxor.u32 %v708, 2147483648
        %v710 = vsel %vm627, %v709, %v708
        %v711 = vsub.s32 4, %v687
        %v712 = vsel %vm627, %v711, %v687
        %v713 = vsel %vm626, %v201, %v710
        %v714 = vsel %vm626, 0, %v712
        %v715 = vcosq.f32.pop %v713
        %v716 = vsinq.f32.pop %v713
        %vm717 = vweird.f32 %v201
        %v718 = vand.u32 %v714, 3
        %vm719 = vcmp.lt.s32.totalorder %v718, 2
        %vm720 = vcmp.eq.s32.totalorder %v718, 0
        %v721 = vxor.u32 %v716, 2147483648
        %v722 = vsel %vm720, %v715, %v721
        %vm723 = vcmp.eq.s32.totalorder %v718, 2
        %v724 = vxor.u32 %v715, 2147483648
        %v725 = vsel %vm723, %v724, %v716
        %v726 = vsel %vm719, %v722, %v725
        %v727 = vsel %vm717, nan, %v726
        %v728 = vand.u32 2147483647, %v202
        %vm729 = vcmp.le.f32.partialorder %v728, 0.7853982
        %vm730 = vcmp.lt.s32.totalorder %v202, 0
        %v731 = vand.u32 %v202, 2139095040
        %v732 = vshrl.u32 %v731, 23
        %v733 = vsub.s32 %v732, 127
        %v734 = vand.u32 2147483647, %v202
        %v735 = vand.u32 %v734, 8388607
        %v736 = vor.u32 %v735, 8388608
        %v737 = vsub.s32 0, %v736
        %v738 = vadd.s32 %v733, 1
        %vm739 = vcmp.gt.s32.totalorder %v738, 0
        %v740 = vsel %vm739, %v738, 0
        %v741 = vshrl.u32 %v740, 5
        %v742 = vand.u32 %v740, 31
        %v743 = vsub.s32 32, %v742
        %v744 = vshrl.u32 683565275, %v743
        %v745 = vshll.u32 683565275, %v742
        %v746 = vshrl.u32 2475754826, %v743
        %v747 = vor.u32 %v745, %v746
        %v748 = vshll.u32 2475754826, %v742
        %v749 = vshrl.u32 2131351028, %v743
        %v750 = vor.u32 %v748, %v749
        %v751 = vshll.u32 2131351028, %v742
        %v752 = vshrl.u32 2102212464, %v743
        %v753 = vor.u32 %v751, %v752
        %v754 = vshll.u32 2102212464, %v742
        %v755 = vshrl.u32 920167782, %v743
        %v756 = vor.u32 %v754, %v755
        %v757 = vshll.u32 920167782, %v742
        %v758 = vshrl.u32 1326507024, %v743
        %v759 = vor.u32 %v757, %v758
        %vm760 = vcmp.lt.s32.totalorder %v741, 1
        %vm761 = vcmp.lt.s32.totalorder %v741, 2
        %vm762 = vcmp.lt.s32.totalorder %v741, 3
        %vm763 = vcmp.lt.s32.totalorder %v741, 4
        %v764 = vsel %vm760, %v744, %v747
        %v765 = vsel %vm763, %v753, 2102212464
        %v766 = vsel %vm762, %v750, %v765
        %v767 = vsel %vm761, %v764, %v766
        %v768 = vsel %vm760, %v747, %v750
        %v769 = vsel %vm763, %v756, 920167782
        %v770 = vsel %vm762, %v753, %v769
        %v771 = vsel %vm761, %v768, %v770
        %v772 = vsel %vm760, %v750, %v753
        %v773 = vsel %vm763, %v759, 1326507024
        %v774 = vsel %vm762, %v756, %v773
        %v775 = vsel %vm761, %v772, %v774
        %v776 = vshll.u32 %v736, 8
        %v777 = vmul.u32.u64.compose %v776, %v775
        %v778 = vextract.low.u32 %v777
        %v779 = vextract.high.u32 %v777
        %v780 = vmul.u32.u64.compose %v776, %v771
        %v781 = vextract.low.u32 %v780
        %v782 = vextract.high.u32 %v780
        %v783 = vmul.u32 %v776, %v767
        %v784 = vadd.s32 %v779, %v781
        %vm785 = vc.u32 %v779, %v781
        %v786 = vadd.s32 %v782, 1
        %v787 = vsel %vm785, %v786, %v782
        %v788 = vadd.s32 %v783, %v787
        %v789 = vadd.s32 %v788, 536870912
        %v790 = vshrl.u32 %v789, 30
        %v791 = vshll.u32 %v790, 30
        %v792 = vsub.s32 %v788, %v791
        %vm793 = vcmp.lt.s32.totalorder %v792, 0
        %v794 = vsub.s32 0, %v792
        %v795 = vsel %vm793, %v794, %v792
        %v796 = vclz %v795
        %v797 = vsub.s32 %v796, 2
        %vm798 = vcmp.gt.s32.totalorder 0, %v797
        %v799 = vsel %vm798, 0, %v797
        %v800 = vsub.s32 32, %v799
        %v801 = vshll.u32 %v792, %v799
        %v802 = vshrl.u32 %v784, %v800
        %v803 = vor.u32 %v801, %v802
        %v804 = vsub.s32 4294967266, %v799
        %v805 = vadd.s32 %v804, 127
        %v806 = vshll.u32 %v805, 23
        %v807 = vor.u32 4788187, %v806
        %v808 = vand.u32 2147483647, %v807
        %v810 = vcvt.s32.f32 %v803
        %v811 = vmul.f32 %v810, %v808
        %v812 = vxor.u32 %v811, 2147483648
        %v813 = vsel %vm730, %v812, %v811
        %v814 = vsub.s32 4, %v790
        %v815 = vsel %vm730, %v814, %v790
        %v816 = vsel %vm729, %v202, %v813
        %v817 = vsel %vm729, 0, %v815
        %v818 = vcosq.f32.pop %v816
        %v819 = vsinq.f32.pop %v816
        %vm820 = vweird.f32 %v202
        %v821 = vand.u32 %v817, 3
        %vm822 = vcmp.lt.s32.totalorder %v821, 2
        %vm823 = vcmp.eq.s32.totalorder %v821, 0
        %v824 = vxor.u32 %v819, 2147483648
        %v825 = vsel %vm823, %v818, %v824
        %vm826 = vcmp.eq.s32.totalorder %v821, 2
        %v827 = vxor.u32 %v818, 2147483648
        %v828 = vsel %vm826, %v827, %v819
        %v829 = vsel %vm822, %v825, %v828
        %v830 = vsel %vm820, nan, %v829
        %v831 = vand.u32 2147483647, %v203
        %vm832 = vcmp.le.f32.partialorder %v831, 0.7853982
        %vm833 = vcmp.lt.s32.totalorder %v203, 0
        %v834 = vand.u32 %v203, 2139095040
        %v835 = vshrl.u32 %v834, 23
        %v836 = vsub.s32 %v835, 127
        %v837 = vand.u32 2147483647, %v203
        %v838 = vand.u32 %v837, 8388607
        %v839 = vor.u32 %v838, 8388608
        %v840 = vsub.s32 0, %v839
        %v841 = vadd.s32 %v836, 1
        %vm842 = vcmp.gt.s32.totalorder %v841, 0
        %v843 = vsel %vm842, %v841, 0
        %v844 = vshrl.u32 %v843, 5
        %v845 = vand.u32 %v843, 31
        %v846 = vsub.s32 32, %v845
        %v847 = vshrl.u32 683565275, %v846
        %v848 = vshll.u32 683565275, %v845
        %v849 = vshrl.u32 2475754826, %v846
        %v850 = vor.u32 %v848, %v849
        %v851 = vshll.u32 2475754826, %v845
        %v852 = vshrl.u32 2131351028, %v846
        %v853 = vor.u32 %v851, %v852
        %v854 = vshll.u32 2131351028, %v845
        %v855 = vshrl.u32 2102212464, %v846
        %v856 = vor.u32 %v854, %v855
        %v857 = vshll.u32 2102212464, %v845
        %v858 = vshrl.u32 920167782, %v846
        %v859 = vor.u32 %v857, %v858
        %v860 = vshll.u32 920167782, %v845
        %v861 = vshrl.u32 1326507024, %v846
        %v862 = vor.u32 %v860, %v861
        %vm863 = vcmp.lt.s32.totalorder %v844, 1
        %vm864 = vcmp.lt.s32.totalorder %v844, 2
        %vm865 = vcmp.lt.s32.totalorder %v844, 3
        %vm866 = vcmp.lt.s32.totalorder %v844, 4
        %v867 = vsel %vm863, %v847, %v850
        %v868 = vsel %vm866, %v856, 2102212464
        %v869 = vsel %vm865, %v853, %v868
        %v870 = vsel %vm864, %v867, %v869
        %v871 = vsel %vm863, %v850, %v853
        %v872 = vsel %vm866, %v859, 920167782
        %v873 = vsel %vm865, %v856, %v872
        %v874 = vsel %vm864, %v871, %v873
        %v875 = vsel %vm863, %v853, %v856
        %v876 = vsel %vm866, %v862, 1326507024
        %v877 = vsel %vm865, %v859, %v876
        %v878 = vsel %vm864, %v875, %v877
        %v879 = vshll.u32 %v839, 8
        %v880 = vmul.u32.u64.compose %v879, %v878
        %v881 = vextract.low.u32 %v880
        %v882 = vextract.high.u32 %v880
        %v883 = vmul.u32.u64.compose %v879, %v874
        %v884 = vextract.low.u32 %v883
        %v885 = vextract.high.u32 %v883
        %v886 = vmul.u32 %v879, %v870
        %v887 = vadd.s32 %v882, %v884
        %vm888 = vc.u32 %v882, %v884
        %v889 = vadd.s32 %v885, 1
        %v890 = vsel %vm888, %v889, %v885
        %v891 = vadd.s32 %v886, %v890
        %v892 = vadd.s32 %v891, 536870912
        %v893 = vshrl.u32 %v892, 30
        %v894 = vshll.u32 %v893, 30
        %v895 = vsub.s32 %v891, %v894
        %vm896 = vcmp.lt.s32.totalorder %v895, 0
        %v897 = vsub.s32 0, %v895
        %v898 = vsel %vm896, %v897, %v895
        %v899 = vclz %v898
        %v900 = vsub.s32 %v899, 2
        %vm901 = vcmp.gt.s32.totalorder 0, %v900
        %v902 = vsel %vm901, 0, %v900
        %v903 = vsub.s32 32, %v902
        %v904 = vshll.u32 %v895, %v902
        %v905 = vshrl.u32 %v887, %v903
        %v906 = vor.u32 %v904, %v905
        %v907 = vsub.s32 4294967266, %v902
        %v908 = vadd.s32 %v907, 127
        %v909 = vshll.u32 %v908, 23
        %v910 = vor.u32 4788187, %v909
        %v911 = vand.u32 2147483647, %v910
        %v913 = vcvt.s32.f32 %v906
        %v914 = vmul.f32 %v913, %v911
        %v915 = vxor.u32 %v914, 2147483648
        %v916 = vsel %vm833, %v915, %v914
        %v917 = vsub.s32 4, %v893
        %v918 = vsel %vm833, %v917, %v893
        %v919 = vsel %vm832, %v203, %v916
        %v920 = vsel %vm832, 0, %v918
        %v921 = vcosq.f32.pop %v919
        %v922 = vsinq.f32.pop %v919
        %vm923 = vweird.f32 %v203
        %v924 = vand.u32 %v920, 3
        %vm925 = vcmp.lt.s32.totalorder %v924, 2
        %vm926 = vcmp.eq.s32.totalorder %v924, 0
        %v927 = vxor.u32 %v922, 2147483648
        %v928 = vsel %vm926, %v921, %v927
        %vm929 = vcmp.eq.s32.totalorder %v924, 2
        %v930 = vxor.u32 %v921, 2147483648
        %v931 = vsel %vm929, %v930, %v922
        %v932 = vsel %vm925, %v928, %v931
        %v933 = vsel %vm923, nan, %v932
        %v934 = vand.u32 2147483647, %v204
        %vm935 = vcmp.le.f32.partialorder %v934, 0.7853982
        %vm936 = vcmp.lt.s32.totalorder %v204, 0
        %v937 = vand.u32 %v204, 2139095040
        %v938 = vshrl.u32 %v937, 23
        %v939 = vsub.s32 %v938, 127
        %v940 = vand.u32 2147483647, %v204
        %v941 = vand.u32 %v940, 8388607
        %v942 = vor.u32 %v941, 8388608
        %v943 = vsub.s32 0, %v942
        %v944 = vadd.s32 %v939, 1
        %vm945 = vcmp.gt.s32.totalorder %v944, 0
        %v946 = vsel %vm945, %v944, 0
        %v947 = vshrl.u32 %v946, 5
        %v948 = vand.u32 %v946, 31
        %v949 = vsub.s32 32, %v948
        %v950 = vshrl.u32 683565275, %v949
        %v951 = vshll.u32 683565275, %v948
        %v952 = vshrl.u32 2475754826, %v949
        %v953 = vor.u32 %v951, %v952
        %v954 = vshll.u32 2475754826, %v948
        %v955 = vshrl.u32 2131351028, %v949
        %v956 = vor.u32 %v954, %v955
        %v957 = vshll.u32 2131351028, %v948
        %v958 = vshrl.u32 2102212464, %v949
        %v959 = vor.u32 %v957, %v958
        %v960 = vshll.u32 2102212464, %v948
        %v961 = vshrl.u32 920167782, %v949
        %v962 = vor.u32 %v960, %v961
        %v963 = vshll.u32 920167782, %v948
        %v964 = vshrl.u32 1326507024, %v949
        %v965 = vor.u32 %v963, %v964
        %vm966 = vcmp.lt.s32.totalorder %v947, 1
        %vm967 = vcmp.lt.s32.totalorder %v947, 2
        %vm968 = vcmp.lt.s32.totalorder %v947, 3
        %vm969 = vcmp.lt.s32.totalorder %v947, 4
        %v970 = vsel %vm966, %v950, %v953
        %v971 = vsel %vm969, %v959, 2102212464
        %v972 = vsel %vm968, %v956, %v971
        %v973 = vsel %vm967, %v970, %v972
        %v974 = vsel %vm966, %v953, %v956
        %v975 = vsel %vm969, %v962, 920167782
        %v976 = vsel %vm968, %v959, %v975
        %v977 = vsel %vm967, %v974, %v976
        %v978 = vsel %vm966, %v956, %v959
        %v979 = vsel %vm969, %v965, 1326507024
        %v980 = vsel %vm968, %v962, %v979
        %v981 = vsel %vm967, %v978, %v980
        %v982 = vshll.u32 %v942, 8
        %v983 = vmul.u32.u64.compose %v982, %v981
        %v984 = vextract.low.u32 %v983
        %v985 = vextract.high.u32 %v983
        %v986 = vmul.u32.u64.compose %v982, %v977
        %v987 = vextract.low.u32 %v986
        %v988 = vextract.high.u32 %v986
        %v989 = vmul.u32 %v982, %v973
        %v990 = vadd.s32 %v985, %v987
        %vm991 = vc.u32 %v985, %v987
        %v992 = vadd.s32 %v988, 1
        %v993 = vsel %vm991, %v992, %v988
        %v994 = vadd.s32 %v989, %v993
        %v995 = vadd.s32 %v994, 536870912
        %v996 = vshrl.u32 %v995, 30
        %v997 = vshll.u32 %v996, 30
        %v998 = vsub.s32 %v994, %v997
        %vm999 = vcmp.lt.s32.totalorder %v998, 0
        %v1000 = vsub.s32 0, %v998
        %v1001 = vsel %vm999, %v1000, %v998
        %v1002 = vclz %v1001
        %v1003 = vsub.s32 %v1002, 2
        %vm1004 = vcmp.gt.s32.totalorder 0, %v1003
        %v1005 = vsel %vm1004, 0, %v1003
        %v1006 = vsub.s32 32, %v1005
        %v1007 = vshll.u32 %v998, %v1005
        %v1008 = vshrl.u32 %v990, %v1006
        %v1009 = vor.u32 %v1007, %v1008
        %v1010 = vsub.s32 4294967266, %v1005
        %v1011 = vadd.s32 %v1010, 127
        %v1012 = vshll.u32 %v1011, 23
        %v1013 = vor.u32 4788187, %v1012
        %v1014 = vand.u32 2147483647, %v1013
        %v1016 = vcvt.s32.f32 %v1009
        %v1017 = vmul.f32 %v1016, %v1014
        %v1018 = vxor.u32 %v1017, 2147483648
        %v1019 = vsel %vm936, %v1018, %v1017
        %v1020 = vsub.s32 4, %v996
        %v1021 = vsel %vm936, %v1020, %v996
        %v1022 = vsel %vm935, %v204, %v1019
        %v1023 = vsel %vm935, 0, %v1021
        %v1024 = vcosq.f32.pop %v1022
        %v1025 = vsinq.f32.pop %v1022
        %vm1026 = vweird.f32 %v204
        %v1027 = vand.u32 %v1023, 3
        %vm1028 = vcmp.lt.s32.totalorder %v1027, 2
        %vm1029 = vcmp.eq.s32.totalorder %v1027, 0
        %v1030 = vxor.u32 %v1025, 2147483648
        %v1031 = vsel %vm1029, %v1024, %v1030
        %vm1032 = vcmp.eq.s32.totalorder %v1027, 2
        %v1033 = vxor.u32 %v1024, 2147483648
        %v1034 = vsel %vm1032, %v1033, %v1025
        %v1035 = vsel %vm1028, %v1031, %v1034
        %v1036 = vsel %vm1026, nan, %v1035
        %1037 = vst [vmem:[%s149 + $0x8] sm:$0xff] %v727
        %1038 = vst [vmem:[%s149 + $0x18] sm:$0xff] %v830
        %1039 = vst [vmem:[%s149 + $0x28] sm:$0xff] %v933
        %1040 = vst [vmem:[%s149 + $0x38] sm:$0xff] %v1036
        %s1041 = sand.u32 %s71, 1
        %s1042 = scalar_lea.sflag [#allocation3], %s1041
        %s1043 = sand.u32 %s71, 1
        %s1044 = smul.addr %s1043, 64
        %s1045 = scalar_lea.vmem [#allocation2], %s1044
        // Predicated region
        $region29: #{sinusoidal_pos_emb.1} parent=27 // pred_check
          %p1046 = pneg %p81
        $region30: #{sinusoidal_pos_emb.1} parent=27 // pred_check_branch
          %1048 = sbr.rel (%p1046) target = $region32
        $region31: #{sinusoidal_pos_emb.1} parent=27 // pred_region
          %s1049 = smul.u32 4, %s16
          %s1050 = ssub.s32 7, %s1049
          %p1051 = scmp.lt.s32.totalorder %s1050, 4
          %s1052 = scalar_select %p1051, %s1050, 4
          %s1053 = smul.u32 128, %s1052
          %s1054 = smul.u32 %s1053, 2
          %s1056 = ssub.s32 1024, %s1054
          %1057 = vsyncadd %s1042, %s1056
          %p1058 = scmp.ne.s32.totalorder 0, %s1054
          %s1059 = smul.addr %s1049, 2
          %s1060 = smul.addr %s1059, 128
          %s1061 = scalar_lea.hbm %s2, %s1060
          %s1062 = smul.u32 16, %s1052
          %s1063 = sshll.u32 %s1045, 4
          %s1064 = int_to_ptr.vmem [resolvable:$true] %s1063
          %s1065 = sshll.u32 %s1062, 4
          %1069 = dma.vmem_to_hbm [thread:$0]  (%p1058), %s1064, %s1065, %s1061, %s1042, 256, 256, 16
        $region32: #{sinusoidal_pos_emb.1} parent=27 // pred_fallthru
          _
      $region28: #{sinusoidal_pos_emb.1} parent=5 // pred_fallthru
        _
      %p1070 = scmp.le.s32.totalorder 2, %s11
      // Predicated region
      $region33: #{sinusoidal_pos_emb.1} parent=5 // pred_check
        %p1071 = pneg %p1070
      $region34: #{sinusoidal_pos_emb.1} parent=5 // pred_check_branch
        %1073 = sbr.rel (%p1071) target = $region36
      $region35: #{sinusoidal_pos_emb.1} parent=5 // pred_region
        %s1074 = ssub.s32 %s11, 2
        // Predicated region
        $region37: #{sinusoidal_pos_emb.1} parent=35 // pred_check
          %p1075 = pneg %p87
        $region38: #{sinusoidal_pos_emb.1} parent=35 // pred_check_branch
          %1077 = sbr.rel (%p1075) target = $region40
        $region39: #{sinusoidal_pos_emb.1} parent=35 // pred_region
          %s1078 = sand.u32 %s72, 1
          %s1079 = scalar_lea.sflag [#allocation3], %s1078
          %s1080 = sand.u32 %s72, 1
          %s1081 = smul.addr %s1080, 64
          %s1082 = scalar_lea.vmem [#allocation2], %s1081
          %1083 = dma.done %s1079, 1024
        $region40: #{sinusoidal_pos_emb.1} parent=35 // pred_fallthru
          _
      $region36: #{sinusoidal_pos_emb.1} parent=5 // pred_fallthru
        _
    $region6: #{sinusoidal_pos_emb.1} parent=1 // loop_footer
      %s15 = sadd.s32 1, %s11
    $region7: #{sinusoidal_pos_emb.1} parent=1 // loop_footer_branch
      %10 = sbr.rel target = $region3
    $region8: #{sinusoidal_pos_emb.1} parent=1 // loop_exit
      _
    %1084 = vsyncpa [#allocation3], 1
    %s1085 = scalar_lea.sflag [#allocation3], 1
    %1086 = vsyncpa %s1085, 1

</llo_original>
